<compile_context>
chip_gen: v7x
topology: tpu7x:2x2x1
jax: 0.10.0
libtpu: 0.0.40
codegen_flags: <defaults>
</compile_context>

<pallas_src>
import functools

import jax
import jax.numpy as jnp
from jax.experimental import pallas as pl
from jax.experimental.pallas import tpu as pltpu


def _round_up(a, b):
    return (a + b - 1) // b * b


def _rgcn_kernel(adj_ref, xw_ref, b_ref, o_ref, *, tk, xw_resident):
    """One grid step: out[row_tile] += adj_r[row_tile, k_tile] @ xw[r][k_tile]."""
    r = pl.program_id(1)  # relation         (reduction axis)
    k = pl.program_id(2)  # contraction tile (reduction axis)

    @pl.when((r == 0) & (k == 0))
    def _():
        # Initialize the resident f32 output accumulator with the bias.
        o_ref[...] = jnp.broadcast_to(b_ref[...], o_ref.shape)

    # int8 (exact 0/1) adjacency -> bf16 operand; cheap VPU cast hidden under DMA.
    adj = adj_ref[...].astype(jnp.bfloat16)

    if xw_resident:
        # Whole (R, N_k_pad, F_pad) xw lives in VMEM; slice the (TK, F_pad) tile.
        start = pl.multiple_of(k * tk, tk)
        xw = xw_ref[r, pl.ds(start, tk), :]
    else:
        xw = xw_ref[...]

    # bf16 x bf16 MXU matmul, f32 accumulation into the resident output block.
    o_ref[...] += jnp.dot(adj, xw, preferred_element_type=jnp.float32)


@jax.jit
def rgcn_forward(adj_stack, x, weight, bias):
    """adj_stack: (R, N, N) dense 0/1 adjacency per relation.
       x:         (N, F_in) f32 node features.
       weight:    (R, F_in, F_out) f32 per-relation weights (basis-combined).
       bias:      (F_out,) f32 (zeros if the module has no bias)."""
    R, N, _ = adj_stack.shape
    F_out = weight.shape[2]

    # Hoist the thin second matmul out of the kernel: xw[r] = x @ W[r].
    # One bf16 rounding of xw (~2^-8 relative); accumulation stays f32.
    xw = jnp.einsum("ni,rio->rno", x, weight).astype(jnp.bfloat16)  # (R, N, F_out)

    # ---- tiling / padding --------------------------------------------------
    F_pad = _round_up(F_out, 128)                 # lane-dense output stores
    TK = min(_round_up(N, 128), 512)              # contraction tile (lane-aligned)
    N_k_pad = _round_up(N, TK)

    TM = 256                                      # row tile (v5e/v6e could go 512)
    while TM > 32 and _round_up(N, TM) // TM < 2:
        TM //= 2                                  # keep >=2 row tiles for megacore
    TM = max(TM, 32)
    N_row_pad = _round_up(N, TM)

    adj_i8 = adj_stack.astype(jnp.int8)           # exact for 0/1 adjacency values
    adj_i8 = jnp.pad(adj_i8, ((0, 0), (0, N_row_pad - N), (0, N_k_pad - N)))
    xw = jnp.pad(xw, ((0, 0), (0, N_k_pad - N), (0, F_pad - F_out)))
    bias2d = jnp.pad(bias.reshape(1, F_out).astype(jnp.float32),
                     ((0, 0), (0, F_pad - F_out)))

    # ---- xw residency decision & VMEM budget -------------------------------
    xw_resident_bytes = 2 * R * N_k_pad * F_pad * 2     # assume double-buffered bf16
    xw_resident = xw_resident_bytes <= (24 << 20)

    adj_buf = 2 * TM * TK * 1                            # int8, double-buffered
    xw_buf = xw_resident_bytes if xw_resident else 2 * TK * F_pad * 2
    out_buf = 2 * TM * F_pad * 4
    bias_buf = 2 * 8 * F_pad * 4
    vmem_limit = int(min(max(2 * (adj_buf + xw_buf + out_buf + bias_buf),
                             16 << 20), 56 << 20))       # < v7x 64 MiB physical

    if xw_resident:
        xw_spec = pl.BlockSpec((R, N_k_pad, F_pad), lambda i, r, k: (0, 0, 0))
    else:
        xw_spec = pl.BlockSpec((None, TK, F_pad), lambda i, r, k: (r, k, 0))

    kernel = functools.partial(_rgcn_kernel, tk=TK, xw_resident=xw_resident)

    out = pl.pallas_call(
        kernel,
        out_shape=jax.ShapeDtypeStruct((N_row_pad, F_pad), jnp.float32),
        grid_spec=pltpu.PrefetchScalarGridSpec(
            num_scalar_prefetch=0,
            grid=(N_row_pad // TM, R, N_k_pad // TK),     # reduction axes last
            in_specs=[
                pl.BlockSpec((None, TM, TK), lambda i, r, k: (r, i, k)),  # adj tile
                xw_spec,                                                   # xw
                pl.BlockSpec((1, F_pad), lambda i, r, k: (0, 0)),          # bias
            ],
            out_specs=pl.BlockSpec((TM, F_pad), lambda i, r, k: (i, 0)),   # resident acc
        ),
        compiler_params=pltpu.CompilerParams(
            dimension_semantics=("parallel", "arbitrary", "arbitrary"),
            vmem_limit_bytes=vmem_limit,
        ),
    )(adj_i8, xw, bias2d)

    return out[:N, :F_out]


def xavier_uniform(key, shape, dtype=jnp.float32):
    """Matches torch.nn.init.xavier_uniform_ fan computation for 2D/3D weights."""
    if len(shape) == 2:
        fan_in, fan_out = shape[1], shape[0]
    else:  # (R, F_in, F_out): torch treats dim0 as "batch" receptive field
        receptive = shape[0]
        fan_in, fan_out = shape[1] * receptive, shape[2] * receptive
    limit = (6.0 / (fan_in + fan_out)) ** 0.5
    return jax.random.uniform(key, shape, dtype, minval=-limit, maxval=limit)


def make_rgcn_params(key, input_size, output_size, num_bases, num_rel, bias=False):
    k1, k2, k3 = jax.random.split(key, 3)
    params = {}
    if num_bases > 0:
        params["w_bases"] = xavier_uniform(k1, (num_bases, input_size, output_size))
        params["w_rel"] = xavier_uniform(k2, (num_rel, num_bases))
    else:
        params["weight"] = xavier_uniform(k3, (num_rel, input_size, output_size))
    params["bias"] = jnp.zeros((output_size,), jnp.float32) if bias else None
    return params


def rgcn_apply(params, x, adj_stack, num_bases, output_size):
    # Basis combination (glue, plain JAX): weight[r] = sum_b w_rel[r,b] * w_bases[b]
    if num_bases > 0:
        weight = jnp.einsum("rb,bio->rio", params["w_rel"], params["w_bases"])
    else:
        weight = params["weight"]
    bias = params["bias"]
    bias1d = bias if bias is not None else jnp.zeros((output_size,), jnp.float32)
    return rgcn_forward(adj_stack, x, weight, bias1d)


if __name__ == "__main__":
    # Small shapes consistent with the module's forward.
    N = 64            # number of graph nodes
    input_size = 32
    output_size = 32
    num_rel = 4
    num_bases = 2

    key = jax.random.PRNGKey(0)
    kp, kx, ka = jax.random.split(key, 3)

    params = make_rgcn_params(kp, input_size, output_size, num_bases, num_rel,
                              bias=False)

    x = jax.random.normal(kx, (N, input_size), jnp.float32)
    # Dense 0/1 adjacency per relation (torch.sparse.mm on a dense-equivalent
    # adjacency gives identical math).
    adj_stack = (jax.random.uniform(ka, (num_rel, N, N)) < 0.1).astype(jnp.float32)

    out = rgcn_apply(params, x, adj_stack, num_bases, output_size)
    out = jax.block_until_ready(out)

    # Reference (plain JAX, pure f32) check of the same math as the PyTorch module.
    # The kernel rounds xw once to bf16 (f32 accumulation), so tolerance is set
    # to the bf16-appropriate 2e-2 rather than bit-exact f32.
    weight = jnp.einsum("rb,bio->rio", params["w_rel"], params["w_bases"])
    tmp = jnp.concatenate([adj_stack[r] @ x for r in range(num_rel)], axis=1)
    ref = tmp @ weight.reshape(num_rel * input_size, output_size)
    assert out.shape == (N, output_size)
    max_err = float(jnp.max(jnp.abs(out - ref)))
    assert jnp.allclose(out, ref, rtol=2e-2, atol=2e-2), max_err

    print("KERNEL_OK")
</pallas_src>

<mosaic_0001>
module attributes {stable_mosaic.version = 11 : i64} {
  func.func @_rgcn_kernel(%arg0: i32, %arg1: i32, %arg2: i32, %arg3: memref<1x32x128xi8, #tpu.memory_space<vmem>>, %arg4: memref<4x128x128xbf16, #tpu.memory_space<vmem>>, %arg5: memref<1x128xf32, #tpu.memory_space<vmem>>, %arg6: memref<32x128xf32, #tpu.memory_space<vmem>>) attributes {dimension_semantics = [#tpu.dimension_semantics<parallel>, #tpu.dimension_semantics<arbitrary>, #tpu.dimension_semantics<arbitrary>], iteration_bounds = array<i64: 2, 4, 1>, scalar_prefetch = 0 : i64, scratch_operands = 0 : i64, tpu.core_type = #tpu.core_type<tc>, window_params = [{transform_indices = @transform_0, window_bounds = array<i64: 1, 32, 128>}, {pipeline_mode = #tpu.pipeline_mode<synchronous>, transform_indices = @transform_1, window_bounds = array<i64: 4, 128, 128>}, {pipeline_mode = #tpu.pipeline_mode<synchronous>, transform_indices = @transform_2, window_bounds = array<i64: 1, 128>}, {transform_indices = @transform_3, window_bounds = array<i64: 32, 128>}]} {
    %c0_i32 = arith.constant 0 : i32
    %0 = arith.cmpi eq, %arg1, %c0_i32 : i32
    %c0_i32_0 = arith.constant 0 : i32
    %1 = arith.cmpi eq, %arg2, %c0_i32_0 : i32
    %2 = arith.andi %0, %1 : i1
    %3 = arith.extui %2 : i1 to i32
    %c0_i32_1 = arith.constant 0 : i32
    %4 = arith.cmpi ne, %3, %c0_i32_1 : i32
    scf.if %4 {
      %c0_9 = arith.constant 0 : index
      %c0_10 = arith.constant 0 : index
      %18 = vector.load %arg5[%c0_9, %c0_10] : memref<1x128xf32, #tpu.memory_space<vmem>>, vector<1x128xf32>
      %19 = vector.shape_cast %18 : vector<1x128xf32> to vector<1x128xf32>
      %20 = vector.broadcast %19 : vector<1x128xf32> to vector<32x128xf32>
      %c0_11 = arith.constant 0 : index
      %c0_12 = arith.constant 0 : index
      %21 = vector.load %arg6[%c0_11, %c0_12] : memref<32x128xf32, #tpu.memory_space<vmem>>, vector<32x128xf32>
      tpu.vector_store %arg6[%c0_11, %c0_12], %20 {strides = array<i32>} : memref<32x128xf32, #tpu.memory_space<vmem>>, vector<32x128xf32>,
    } else {
    }
    %c0 = arith.constant 0 : index
    %c0_2 = arith.constant 0 : index
    %c0_3 = arith.constant 0 : index
    %5 = vector.load %arg3[%c0, %c0_2, %c0_3] : memref<1x32x128xi8, #tpu.memory_space<vmem>>, vector<1x32x128xi8>
    %6 = vector.shape_cast %5 : vector<1x32x128xi8> to vector<32x128xi8>
    %7 = arith.sitofp %6 : vector<32x128xi8> to vector<32x128xbf16>
    %c128_i32 = arith.constant 128 : i32
    %8 = arith.muli %arg2, %c128_i32 : i32
    %9 = tpu.assume_multiple %8, 128 : i32
    %10 = arith.index_cast %arg1 : i32 to index
    %11 = arith.index_cast %9 : i32 to index
    %c0_4 = arith.constant 0 : index
    %12 = vector.load %arg4[%10, %11, %c0_4] : memref<4x128x128xbf16, #tpu.memory_space<vmem>>, vector<1x128x128xbf16>
    %13 = vector.shape_cast %12 : vector<1x128x128xbf16> to vector<128x128xbf16>
    %c0_5 = arith.constant 0 : index
    %c0_6 = arith.constant 0 : index
    %14 = vector.load %arg6[%c0_5, %c0_6] : memref<32x128xf32, #tpu.memory_space<vmem>>, vector<32x128xf32>
    %cst = arith.constant dense<0.000000e+00> : vector<32x128xf32>
    %15 = tpu.matmul %7, %13, %cst {dimension_numbers = #tpu.dot_dimension_numbers<[1], [0], [0], [1], [0, 0, 1, 1], [], []>} : vector<32x128xbf16>, vector<128x128xbf16>, vector<32x128xf32> -> vector<32x128xf32>
    %16 = arith.addf %14, %15 : vector<32x128xf32>
    %c0_7 = arith.constant 0 : index
    %c0_8 = arith.constant 0 : index
    %17 = vector.load %arg6[%c0_7, %c0_8] : memref<32x128xf32, #tpu.memory_space<vmem>>, vector<32x128xf32>
    tpu.vector_store %arg6[%c0_7, %c0_8], %16 {strides = array<i32>} : memref<32x128xf32, #tpu.memory_space<vmem>>, vector<32x128xf32>,
    return
  }
  func.func @transform_0(%arg0: i32, %arg1: i32, %arg2: i32) -> (i32, i32, i32) {
    %c0_i32 = arith.constant 0 : i32
    return %arg1, %arg0, %arg2 : i32, i32, i32
  }
  func.func @transform_1(%arg0: i32, %arg1: i32, %arg2: i32) -> (i32, i32, i32) {
    %c0_i32 = arith.constant 0 : i32
    %c0_i32_0 = arith.constant 0 : i32
    %c0_i32_1 = arith.constant 0 : i32
    %c0_i32_2 = arith.constant 0 : i32
    return %c0_i32, %c0_i32_0, %c0_i32_1 : i32, i32, i32
  }
  func.func @transform_2(%arg0: i32, %arg1: i32, %arg2: i32) -> (i32, i32) {
    %c0_i32 = arith.constant 0 : i32
    %c0_i32_0 = arith.constant 0 : i32
    %c0_i32_1 = arith.constant 0 : i32
    return %c0_i32, %c0_i32_0 : i32, i32
  }
  func.func @transform_3(%arg0: i32, %arg1: i32, %arg2: i32) -> (i32, i32) {
    %c0_i32 = arith.constant 0 : i32
    %c0_i32_0 = arith.constant 0 : i32
    return %arg0, %c0_i32 : i32, i32
  }
}

</mosaic_0001>

<llo_original>
// kernel: rgcn_forward.1
$region0: #{rgcn_forward.1}
  #allocation0 [shape = 'u32[]', space=smem, size = 0x4, offset = 0x4, fixed_abs, tag = 'smem constant byte address 0x4 - core index']
  #allocation1 [shape = 'u32[144,128]{1,0:T(1,128)}', space=vmem, size = 0x12000, scoped, tag = 'internal scratch']
  %s0 = inlined_call_operand.vmem [shape: s8[4,64,128], index: 0, kind: input, shape index: {}]
  %s1 = inlined_call_operand.vmem [shape: bf16[4,128,128], index: 1, kind: input, shape index: {}]
  %s2 = inlined_call_operand.vmem [shape: f32[1,128], index: 2, kind: input, shape index: {}]
  %s3 = inlined_call_operand.vmem [shape: f32[64,128], index: 3, kind: output, shape index: {}]
  %s4 = sld [smem:[#allocation0]]
  $region49: #{rgcn_forward.1} parent=0
    _
  %s6 = ssub.s32 1, %s4
  %s7 = scalar_select 0, %s6, %s4
  loop: start=0, step=1, limit=10
  $region2: #{rgcn_forward.1} parent=0 // loop_pre_header
    _
  $region3: #{rgcn_forward.1} parent=0 // loop_header
    %s9 = sphi 0, %s13
    %p10 = scmp.ge.s32.totalorder %s9, 10
    %s16 = sphi 0, %s35
    %s17 = sphi 0, %s31
    %s18 = sphi 0, %s27
    %s19 = sphi 0, %s16
    %s20 = sphi 0, %s17
    %s21 = sphi 0, %s18
    %s22 = sphi 0, %s19
    %s23 = sphi 0, %s20
    %s24 = sphi 0, %s21
    %s42 = sphi 0, %s44
    %s45 = sphi 0, %s42
    %s46 = sphi 0, %s45
    %s62 = sphi 0, %s46
    %s66 = sphi 0, %s66
    %s68 = sphi 0, %s66
    %s69 = sphi 0, %s68
    %s83 = sphi 0, %s69
    %s87 = sphi 0, %s87
    %s89 = sphi 0, %s87
    %s90 = sphi 0, %s89
    %s104 = sphi 0, %s90
    %s110 = sphi 0, %s112
    %s113 = sphi 0, %s110
    %s114 = sphi 0, %s113
    %s130 = sphi 0, %s114
  $region4: #{rgcn_forward.1} parent=0 // loop_header_branch
    %12 = sbr.rel (%p10) target = $region8
  $region5: #{rgcn_forward.1} parent=0 // loop_body
    %s14 = ssub.s32 %s9, 1
    %s15 = ssub.s32 %s9, 2
    %s25 = sadd.s32 1, %s18
    %p26 = scmp.ge.s32.totalorder %s25, 1
    %s27 = scalar_select %p26, 0, %s25
    %s28 = sadd.s32 1, %s17
    %s29 = scalar_select %p26, %s28, %s17
    %p30 = scmp.ge.s32.totalorder %s29, 4
    %s31 = scalar_select %p30, 0, %s29
    %s32 = sadd.s32 1, %s16
    %s33 = scalar_select %p30, %s32, %s16
    %p34 = scmp.ge.s32.totalorder %s33, 2
    %s35 = scalar_select %p34, 0, %s33
    %s36 = ssub.s32 %s17, %s31
    %s37 = ssub.s32 %s16, %s35
    %s38 = sor.u32 %s36, %s37
    %s39 = ssub.s32 %s18, %s27
    %s40 = sor.u32 %s38, %s39
    %p41 = scmp.eq.s32.totalorder %s40, 0
    %s43 = sadd.s32 %s42, 1
    %s44 = scalar_select %p41, %s42, %s43
    %p47 = pneg %p41
    %p48 = scmp.eq.s32.totalorder %s9, 7
    %p49 = por %p47, %p48
    %p50 = scmp.ne.s32.totalorder %s42, %s45
    %p51 = scmp.eq.s32.totalorder %s9, 0
    %p52 = por %p50, %p51
    %p53 = scmp.ne.s32.totalorder %s42, %s45
    %p54 = scmp.eq.s32.totalorder %s14, 7
    %p55 = por %p53, %p54
    %p56 = scmp.ne.s32.totalorder %s45, %s46
    %p57 = scmp.eq.s32.totalorder %s14, 0
    %p58 = por %p56, %p57
    %p59 = scmp.ne.s32.totalorder %s45, %s46
    %p60 = scmp.eq.s32.totalorder %s15, 7
    %p61 = por %p59, %p60
    %p63 = scmp.ne.s32.totalorder %s46, %s62
    %p64 = scmp.eq.s32.totalorder %s15, 0
    %p65 = por %p63, %p64
    %s67 = sadd.s32 %s66, 1
    %p70 = scmp.eq.s32.totalorder %s9, 7
    %p71 = scmp.ne.s32.totalorder %s66, %s68
    %p72 = scmp.eq.s32.totalorder %s9, 0
    %p73 = por %p71, %p72
    %p74 = scmp.ne.s32.totalorder %s66, %s68
    %p75 = scmp.eq.s32.totalorder %s14, 7
    %p76 = por %p74, %p75
    %p77 = scmp.ne.s32.totalorder %s68, %s69
    %p78 = scmp.eq.s32.totalorder %s14, 0
    %p79 = por %p77, %p78
    %p80 = scmp.ne.s32.totalorder %s68, %s69
    %p81 = scmp.eq.s32.totalorder %s15, 7
    %p82 = por %p80, %p81
    %p84 = scmp.ne.s32.totalorder %s69, %s83
    %p85 = scmp.eq.s32.totalorder %s15, 0
    %p86 = por %p84, %p85
    %s88 = sadd.s32 %s87, 1
    %p91 = scmp.eq.s32.totalorder %s9, 7
    %p92 = scmp.ne.s32.totalorder %s87, %s89
    %p93 = scmp.eq.s32.totalorder %s9, 0
    %p94 = por %p92, %p93
    %p95 = scmp.ne.s32.totalorder %s87, %s89
    %p96 = scmp.eq.s32.totalorder %s14, 7
    %p97 = por %p95, %p96
    %p98 = scmp.ne.s32.totalorder %s89, %s90
    %p99 = scmp.eq.s32.totalorder %s14, 0
    %p100 = por %p98, %p99
    %p101 = scmp.ne.s32.totalorder %s89, %s90
    %p102 = scmp.eq.s32.totalorder %s15, 7
    %p103 = por %p101, %p102
    %p105 = scmp.ne.s32.totalorder %s90, %s104
    %p106 = scmp.eq.s32.totalorder %s15, 0
    %p107 = por %p105, %p106
    %s108 = ssub.s32 %s16, %s35
    %p109 = scmp.eq.s32.totalorder %s108, 0
    %s111 = sadd.s32 %s110, 1
    %s112 = scalar_select %p109, %s110, %s111
    %p115 = pneg %p109
    %p116 = scmp.eq.s32.totalorder %s9, 7
    %p117 = por %p115, %p116
    %p118 = scmp.ne.s32.totalorder %s110, %s113
    %p119 = scmp.eq.s32.totalorder %s9, 0
    %p120 = por %p118, %p119
    %p121 = scmp.ne.s32.totalorder %s110, %s113
    %p122 = scmp.eq.s32.totalorder %s14, 7
    %p123 = por %p121, %p122
    %p124 = scmp.ne.s32.totalorder %s113, %s114
    %p125 = scmp.eq.s32.totalorder %s14, 0
    %p126 = por %p124, %p125
    %p127 = scmp.ne.s32.totalorder %s113, %s114
    %p128 = scmp.eq.s32.totalorder %s15, 7
    %p129 = por %p127, %p128
    %p131 = scmp.ne.s32.totalorder %s114, %s130
    %p132 = scmp.eq.s32.totalorder %s15, 0
    %p133 = por %p131, %p132
    %p134 = scmp.le.s32.totalorder 1, %s9
    %p135 = scmp.lt.s32.totalorder %s9, 9
    %p136 = pnand %p134, %p135
    %p137 = pneg %p136
    // Predicated region
    $region9: #{rgcn_forward.1} parent=5 // pred_check
      _
    $region10: #{rgcn_forward.1} parent=5 // pred_check_branch
      %139 = sbr.rel (%p136) target = $region12
    $region11: #{rgcn_forward.1} parent=5 // pred_region
      %s140 = ssub.s32 %s9, 1
      // Predicated region
      $region13: #{rgcn_forward.1} parent=11 // pred_check
        %p141 = pneg %p79
      $region14: #{rgcn_forward.1} parent=11 // pred_check_branch
        %143 = sbr.rel (%p141) target = $region16
      $region15: #{rgcn_forward.1} parent=11 // pred_region
        _
      $region16: #{rgcn_forward.1} parent=11 // pred_fallthru
        _
      // Predicated region
      $region17: #{rgcn_forward.1} parent=11 // pred_check
        %p144 = pneg %p100
      $region18: #{rgcn_forward.1} parent=11 // pred_check_branch
        %146 = sbr.rel (%p144) target = $region20
      $region19: #{rgcn_forward.1} parent=11 // pred_region
        _
      $region20: #{rgcn_forward.1} parent=11 // pred_fallthru
        _
    $region12: #{rgcn_forward.1} parent=5 // pred_fallthru
      _
    %p147 = scmp.lt.s32.totalorder %s9, 8
    // Predicated region
    $region21: #{rgcn_forward.1} parent=5 // pred_check
      %p148 = pneg %p147
    $region22: #{rgcn_forward.1} parent=5 // pred_check_branch
      %150 = sbr.rel (%p148) target = $region24
    $region23: #{rgcn_forward.1} parent=5 // pred_region
      // Predicated region
      $region25: #{rgcn_forward.1} parent=23 // pred_check
        %p151 = pneg %p52
      $region26: #{rgcn_forward.1} parent=23 // pred_check_branch
        %153 = sbr.rel (%p151) target = $region28
      $region27: #{rgcn_forward.1} parent=23 // pred_region
        %p154 = scmp.lt.s32.totalorder %s17, 3
        %s155 = scalar_select %p154, %s17, 3
        %p156 = scmp.lt.s32.totalorder %s16, 1
        %s157 = scalar_select %p156, %s16, 1
        %p158 = scmp.lt.s32.totalorder %s18, 0
        %s159 = scalar_select %p158, %s18, 0
        %s160 = sadd.s32 %s159, %s157
        %s161 = smul.addr %s155, 2
        %s162 = sadd.s32 %s160, %s161
        %s163 = smul.addr %s162, 8
        %s164 = scalar_lea.vmem %s0, %s163
      $region28: #{rgcn_forward.1} parent=23 // pred_fallthru
        _
    $region24: #{rgcn_forward.1} parent=5 // pred_fallthru
      _
    %p165 = scmp.le.s32.totalorder 1, %s9
    %p166 = scmp.lt.s32.totalorder %s9, 9
    %p167 = pnand %p165, %p166
    %p168 = pneg %p167
    // Predicated region
    $region29: #{rgcn_forward.1} parent=5 // pred_check
      _
    $region30: #{rgcn_forward.1} parent=5 // pred_check_branch
      %170 = sbr.rel (%p167) target = $region32
    $region31: #{rgcn_forward.1} parent=5 // pred_region
      %s171 = ssub.s32 %s9, 1
      %p172 = scmp.lt.s32.totalorder %s20, 3
      %s173 = scalar_select %p172, %s20, 3
      %p174 = scmp.lt.s32.totalorder %s19, 1
      %s175 = scalar_select %p174, %s19, 1
      %p176 = scmp.lt.s32.totalorder %s21, 0
      %s177 = scalar_select %p176, %s21, 0
      %s178 = sadd.s32 %s177, %s175
      %s179 = smul.addr %s173, 2
      %s180 = sadd.s32 %s178, %s179
      %s181 = smul.addr %s180, 8
      %s182 = scalar_lea.vmem %s0, %s181
      %p183 = pneg %p58
      %p184 = pneg %p55
      %p185 = pneg %p79
      %p186 = pneg %p76
      %p187 = pneg %p100
      %p188 = pneg %p97
      %p189 = pneg %p126
      %p190 = pneg %p123
      %s191 = smul.u32 4, %s19
      %p192 = scmp.lt.s32.totalorder %s191, 7
      %s193 = scalar_select %p192, %s191, 7
      %s194 = smul.addr %s193, 8
      %s195 = scalar_lea.vmem %s3, %s194
      %p196 = scmp.lt.s32.totalorder %s20, 3
      %s197 = scalar_select %p196, %s20, 3
      %p198 = scmp.lt.s32.totalorder %s19, 1
      %s199 = scalar_select %p198, %s19, 1
      %p200 = scmp.lt.s32.totalorder %s21, 0
      %s201 = scalar_select %p200, %s21, 0
      %s202 = sadd.s32 %s201, %s199
      %s203 = smul.addr %s197, 2
      %s204 = sadd.s32 %s202, %s203
      %s205 = smul.addr %s204, 8
      %s206 = scalar_lea.vmem %s0, %s205
      %s207 = smul.u32 4, %s19
      %p208 = scmp.lt.s32.totalorder %s207, 7
      %s209 = scalar_select %p208, %s207, 7
      %s210 = smul.addr %s209, 8
      %s211 = scalar_lea.vmem %s3, %s210
      %s212 = smul.u32 4, %s19
      %p214 = scmp.eq.s32.totalorder %s20, 0
      %p215 = scmp.eq.s32.totalorder %s21, 0
      %p216 = pnand %p214, %p215
      %p217 = pneg %p216
      // Predicated region
      $region33: #{rgcn_forward.1} parent=31 // pred_check
        _
      $region34: #{rgcn_forward.1} parent=31 // pred_check_branch
        %219 = sbr.rel (%p216) target = $region36
      $region35: #{rgcn_forward.1} parent=31 // pred_region
        %v220 = vld [vmem:[%s2] sm:$0x1]
        %v222 = vlaneseq
        %v223 = vshrl.u32 %v222, 7
        %v224 = vsub.s32 0, %v223
        %v225 = vrot.slane %v220, %v224
        %227 = vst [vmem:[%s211] sm:$0xff] %v225
        %228 = vst [vmem:[%s211 + $0x8] sm:$0xff] %v225
        %229 = vst [vmem:[%s211 + $0x10] sm:$0xff] %v225
        %230 = vst [vmem:[%s211 + $0x18] sm:$0xff] %v225
      $region36: #{rgcn_forward.1} parent=31 // pred_fallthru
        _
      %v231 = vld [vmem:[%s206] sm:$0xff]
      %v232 = vunpack.c.l.s8.bf16 %v231
      %v233 = vunpack.c.h.s8.bf16 %v231
      %s234 = smul.u32 %s21, 128
      %s235 = sshra.s32 %s234, 3
      %s236 = sand.u32 %s234, 7
      %s237 = smul.u32 %s20, 16
      %s238 = sadd.s32 %s235, %s237
      %s239 = smul.addr %s238, 4
      %s240 = scalar_lea.vmem %s1, %s239
      %v241 = vld [vmem:[%s240] sm:$0xf]
      %v242 = vld [vmem:[%s240 + $0x4] sm:$0xf]
      %v243 = vld [vmem:[%s240 + $0x8] sm:$0xf]
      %v244 = vld [vmem:[%s240 + $0xc] sm:$0xf]
      %v245 = vld [vmem:[%s240 + $0x10] sm:$0xf]
      %v246 = vld [vmem:[%s240 + $0x14] sm:$0xf]
      %v247 = vld [vmem:[%s240 + $0x18] sm:$0xf]
      %v248 = vld [vmem:[%s240 + $0x1c] sm:$0xf]
      %v249 = vld [vmem:[%s240 + $0x20] sm:$0xf]
      %v250 = vld [vmem:[%s240 + $0x24] sm:$0xf]
      %v251 = vld [vmem:[%s240 + $0x28] sm:$0xf]
      %v252 = vld [vmem:[%s240 + $0x2c] sm:$0xf]
      %v253 = vld [vmem:[%s240 + $0x30] sm:$0xf]
      %v254 = vld [vmem:[%s240 + $0x34] sm:$0xf]
      %v255 = vld [vmem:[%s240 + $0x38] sm:$0xf]
      %v256 = vld [vmem:[%s240 + $0x3c] sm:$0xf]
      %v257 = vld [vmem:[%s211] sm:$0xff]
      %v258 = vld [vmem:[%s211 + $0x8] sm:$0xff]
      %v259 = vld [vmem:[%s211 + $0x10] sm:$0xff]
      %v260 = vld [vmem:[%s211 + $0x18] sm:$0xff]
      %v277 = vunpack.c.l.b16 %v241
      %v278 = vunpack.c.l.b16 %v242
      %v279 = vunpack.c.l.b16 %v243
      %v280 = vunpack.c.l.b16 %v244
      %v281 = vunpack.c.l.b16 %v245
      %v282 = vunpack.c.l.b16 %v246
      %v283 = vunpack.c.l.b16 %v247
      %v284 = vunpack.c.l.b16 %v248
      %v285 = vunpack.c.l.b16 %v249
      %v286 = vunpack.c.l.b16 %v250
      %v287 = vunpack.c.l.b16 %v251
      %v288 = vunpack.c.l.b16 %v252
      %v289 = vunpack.c.l.b16 %v253
      %v290 = vunpack.c.l.b16 %v254
      %v291 = vunpack.c.l.b16 %v255
      %v292 = vunpack.c.l.b16 %v256
      %v293 = vpack.c.b16 %v278, %v277
      %v294 = vpack.c.b16 %v280, %v279
      %v295 = vpack.c.b16 %v282, %v281
      %v296 = vpack.c.b16 %v284, %v283
      %v297 = vpack.c.b16 %v286, %v285
      %v298 = vpack.c.b16 %v288, %v287
      %v299 = vpack.c.b16 %v290, %v289
      %v300 = vpack.c.b16 %v292, %v291
      %309 = vmatprep.subr.bf16.mxu0 0
      %310 = vmatpush1.bf16.msra.mxu0 %v293
      %311 = vmatprep.subr.bf16.mxu0 0
      %312 = vmatpush1.bf16.msra.mxu0 %v294
      %313 = vmatprep.subr.bf16.mxu0 0
      %314 = vmatpush1.bf16.msra.mxu0 %v295
      %315 = vmatprep.subr.bf16.mxu0 0
      %316 = vmatpush1.bf16.msra.mxu0 %v296
      %317 = vmatprep.subr.bf16.mxu0 0
      %318 = vmatpush1.bf16.msra.mxu0 %v297
      %319 = vmatprep.subr.bf16.mxu0 0
      %320 = vmatpush1.bf16.msra.mxu0 %v298
      %321 = vmatprep.subr.bf16.mxu0 0
      %322 = vmatpush1.bf16.msra.mxu0 %v299
      %323 = vmatprep.subr.bf16.mxu0 0
      %324 = vmatpush1.bf16.msra.mxu0 %v300
      %325 = vmatprep.subr.bf16.mxu0 0
      %326 = vmatpush1.bf16.msra.mxu0 0
      %327 = vmatprep.subr.bf16.mxu0 0
      %328 = vmatpush1.bf16.msra.mxu0 0
      %329 = vmatprep.subr.bf16.mxu0 0
      %330 = vmatpush1.bf16.msra.mxu0 0
      %331 = vmatprep.subr.bf16.mxu0 0
      %332 = vmatpush1.bf16.msra.mxu0 0
      %333 = vmatprep.subr.bf16.mxu0 0
      %334 = vmatpush1.bf16.msra.mxu0 0
      %335 = vmatprep.subr.bf16.mxu0 0
      %336 = vmatpush1.bf16.msra.mxu0 0
      %337 = vmatprep.subr.bf16.mxu0 0
      %338 = vmatpush1.bf16.msra.mxu0 0
      %339 = vmatprep.subr.bf16.mxu0 0
      %340 = vmatpush1.bf16.msra.mxu0 0
      %341 = vmatprep.mubr.bf16.mxu0 0
      %342 = vmatmul.mubr.bf16.gmra.mrb[0].mxu0 %v232
      %v343 = vpop.f32.mrb[0].mxu0
      %v344 = vadd.f32 0.0, %v343
      %v345 = vpop.f32.mrb[0].mxu0
      %v346 = vpop.f32.mrb[0].mxu0
      %v347 = vadd.f32 0.0, %v346
      %v348 = vpop.f32.mrb[0].mxu0
      %349 = vmatprep.mubr.bf16.mxu0 0
      %350 = vmatmul.mubr.bf16.gmra.mrb[0].mxu0 %v233
      %v351 = vpop.f32.mrb[0].mxu0
      %v352 = vadd.f32 0.0, %v351
      %v353 = vpop.f32.mrb[0].mxu0
      %v354 = vpop.f32.mrb[0].mxu0
      %v355 = vadd.f32 0.0, %v354
      %v356 = vpop.f32.mrb[0].mxu0
      %357 = vdwg.mxu0
      %v358 = vadd.f32 %v257, %v344
      %v359 = vadd.f32 %v258, %v347
      %v360 = vadd.f32 %v259, %v352
      %v361 = vadd.f32 %v260, %v355
      %362 = vst [vmem:[%s211] sm:$0xff] %v358
      %363 = vst [vmem:[%s211 + $0x8] sm:$0xff] %v359
      %364 = vst [vmem:[%s211 + $0x10] sm:$0xff] %v360
      %365 = vst [vmem:[%s211 + $0x18] sm:$0xff] %v361
      %s366 = smul.u32 4, %s19
      %p367 = scmp.lt.s32.totalorder %s366, 7
      %s368 = scalar_select %p367, %s366, 7
      %s369 = smul.addr %s368, 8
      %s370 = scalar_lea.vmem %s3, %s369
      // Predicated region
      $region37: #{rgcn_forward.1} parent=31 // pred_check
        %p371 = pneg %p123
      $region38: #{rgcn_forward.1} parent=31 // pred_check_branch
        %373 = sbr.rel (%p371) target = $region40
      $region39: #{rgcn_forward.1} parent=31 // pred_region
        %s374 = smul.u32 4, %s19
      $region40: #{rgcn_forward.1} parent=31 // pred_fallthru
        _
    $region32: #{rgcn_forward.1} parent=5 // pred_fallthru
      _
    %p375 = scmp.le.s32.totalorder 2, %s9
    // Predicated region
    $region41: #{rgcn_forward.1} parent=5 // pred_check
      %p376 = pneg %p375
    $region42: #{rgcn_forward.1} parent=5 // pred_check_branch
      %378 = sbr.rel (%p376) target = $region44
    $region43: #{rgcn_forward.1} parent=5 // pred_region
      %s379 = ssub.s32 %s9, 2
      // Predicated region
      $region45: #{rgcn_forward.1} parent=43 // pred_check
        %p380 = pneg %p129
      $region46: #{rgcn_forward.1} parent=43 // pred_check_branch
        %382 = sbr.rel (%p380) target = $region48
      $region47: #{rgcn_forward.1} parent=43 // pred_region
        %s383 = smul.u32 4, %s22
        %p384 = scmp.lt.s32.totalorder %s383, 7
        %s385 = scalar_select %p384, %s383, 7
        %s386 = smul.addr %s385, 8
        %s387 = scalar_lea.vmem %s3, %s386
      $region48: #{rgcn_forward.1} parent=43 // pred_fallthru
        _
    $region44: #{rgcn_forward.1} parent=5 // pred_fallthru
      _
  $region6: #{rgcn_forward.1} parent=0 // loop_footer
    %s13 = sadd.s32 1, %s9
  $region7: #{rgcn_forward.1} parent=0 // loop_footer_branch
    %8 = sbr.rel target = $region3
  $region8: #{rgcn_forward.1} parent=0 // loop_exit
    _

</llo_original>
